<compile_context>
chip_gen: v7x
topology: tpu7x:2x2x1
jax: 0.10.0
libtpu: 0.0.40
codegen_flags: <defaults>
</compile_context>

<pallas_src>
import functools

import jax
import jax.numpy as jnp
from jax import lax
from jax.experimental import pallas as pl
from jax.experimental.pallas import tpu as pltpu


# --------------------------------------------------------------------------- #
# Table construction (matches Rotary.__init__, pre-interleaved per head).      #
# --------------------------------------------------------------------------- #
def make_rotary_tables(dim: int, num_heads: int, max_seq_len: int = 65536):
    """Returns two float32 tables of shape (max_seq_len, num_heads*dim):

      cos_f : cos coefficient for every (head, channel)
      sin_s : signed sin coefficient (+sin on first half of each head,
              -sin on the second half)

    On the head-major flattened axis (j = h*dim + d, n = num_heads*dim):
      y[j] = x[j]*cos_f[j] + partner[j]*sin_s[j]
      partner[j] = x[j + dim//2]  if d <  dim//2
                 = x[j - dim//2]  if d >= dim//2
    which reproduces  y1 = x1*cos + x2*sin ; y2 = -x1*sin + x2*cos  per head.
    """
    quarter = dim // 4
    inv_freq = (1.0 / 1024.0) ** jnp.linspace(0.0, 1.0, num=quarter, dtype=jnp.float32)
    inv_freq = jnp.concatenate([inv_freq, jnp.zeros((quarter,), dtype=jnp.float32)])
    t = jnp.arange(max_seq_len, dtype=jnp.float32)
    theta = t[:, None] * inv_freq[None, :]                   # (T, dim//2)
    cos, sin = jnp.cos(theta), jnp.sin(theta)

    cos_d = jnp.concatenate([cos, cos], axis=-1)              # (T, dim)
    sin_d = jnp.concatenate([sin, -sin], axis=-1)              # (T, dim), signed

    tile_heads = lambda a: jnp.tile(a, (1, num_heads))         # head-major (T, H*dim)
    return tile_heads(cos_d), tile_heads(sin_d)


# --------------------------------------------------------------------------- #
# Kernel.                                                                      #
# --------------------------------------------------------------------------- #
def _rotary_kernel(cos_ref, sin_ref, x_ref, o_ref, *, head_dim):
    # x_ref/o_ref: (tT, H*D) lane-dense block (batch squeezed); tables: (tT, H*D)
    x = x_ref[...].astype(jnp.float32)
    tT, n = x.shape
    half = head_dim // 2
    # np.roll semantics: roll(x, s)[j] = x[(j - s) % n]
    x_fwd = pltpu.roll(x, shift=n - half, axis=1)   # x_fwd[j] = x[(j + half) % n]
    x_bwd = pltpu.roll(x, shift=half, axis=1)       # x_bwd[j] = x[(j - half) % n]
    # First-half-of-head lanes take the +half partner, second-half take -half.
    lane = lax.broadcasted_iota(jnp.int32, (tT, n), 1)
    first_half = (lane % head_dim) < half
    partner = jnp.where(first_half, x_fwd, x_bwd)
    y = x * cos_ref[...] + partner * sin_ref[...]
    o_ref[...] = y.astype(o_ref.dtype)


def _pick_seq_tile(T: int, hd: int, target_elems: int = 256 * 1024) -> int:
    """Sequence tile: ~0.5 MiB bf16 x-block, multiple of 16, divisor of T if possible."""
    tT = min(T, max(16, (target_elems // max(hd, 1)) // 16 * 16))
    if tT < T:
        while T % tT != 0 and tT > 16:
            tT -= 16
        if T % tT != 0:
            tT = T
    return tT


@jax.jit
def rotary_forward(x, cos_f, sin_s):
    """Apply rotary embedding. x: (B, T, H, D). Returns same shape/dtype."""
    B, T, H, D = x.shape
    hd = H * D
    tT = _pick_seq_tile(T, hd)
    grid = (pl.cdiv(T, tT), B)                  # batch innermost: table blocks reused

    x_flat = x.reshape(B, T, hd)                # free: contiguous head-major flatten

    out_flat = pl.pallas_call(
        functools.partial(_rotary_kernel, head_dim=D),
        out_shape=jax.ShapeDtypeStruct((B, T, hd), x.dtype),
        grid=grid,
        in_specs=[
            pl.BlockSpec((tT, hd), lambda t, b: (t, 0)),           # cos
            pl.BlockSpec((tT, hd), lambda t, b: (t, 0)),           # signed sin
            pl.BlockSpec((None, tT, hd), lambda t, b: (b, t, 0)),  # x (batch squeezed)
        ],
        out_specs=pl.BlockSpec((None, tT, hd), lambda t, b: (b, t, 0)),
        input_output_aliases={2: 0},            # in-place rotary
        compiler_params=pltpu.CompilerParams(
            dimension_semantics=("parallel", "parallel"),
        ),
    )(cos_f[:T], sin_s[:T], x_flat)

    return out_flat.reshape(B, T, H, D)


# --------------------------------------------------------------------------- #
# Pure-JAX reference matching the PyTorch forward exactly.                     #
# --------------------------------------------------------------------------- #
def _rotary_reference(x):
    D = x.shape[-1]
    T = x.shape[-3]
    quarter = D // 4
    inv_freq = (1.0 / 1024.0) ** jnp.linspace(0.0, 1.0, num=quarter, dtype=jnp.float32)
    inv_freq = jnp.concatenate([inv_freq, jnp.zeros((quarter,), dtype=jnp.float32)])
    t = jnp.arange(T, dtype=jnp.float32)
    theta = t[:, None] * inv_freq[None, :]
    cos = jnp.cos(theta)[None, :, None, :]
    sin = jnp.sin(theta)[None, :, None, :]
    xf = x.astype(jnp.float32)
    half = D // 2
    x1, x2 = xf[..., :half], xf[..., half:]
    y1 = x1 * cos + x2 * sin
    y2 = x1 * (-sin) + x2 * cos
    return jnp.concatenate((y1, y2), axis=-1).astype(x.dtype)


if __name__ == "__main__":
    # Small shapes consistent with the module: B=2, T=8, H=4, head_dim=32.
    B, T, H, D = 2, 8, 4, 32
    MAX_SEQ_LEN = 64  # small table for the demo; module default is 65536

    key = jax.random.PRNGKey(0)
    x = jax.random.normal(key, (B, T, H, D), dtype=jnp.float32).astype(jnp.bfloat16)

    ref = _rotary_reference(x)

    cos_f, sin_s = make_rotary_tables(D, H, MAX_SEQ_LEN)
    out = rotary_forward(x, cos_f, sin_s)
    out = jax.block_until_ready(out)

    assert out.shape == (B, T, H, D) and out.dtype == x.dtype
    assert jnp.allclose(out.astype(jnp.float32), ref.astype(jnp.float32),
                        atol=1e-2, rtol=1e-2)

    print("KERNEL_OK")
</pallas_src>

<mosaic_0001>
module attributes {stable_mosaic.version = 11 : i64} {
  func.func @_rotary_kernel(%arg0: i32, %arg1: i32, %arg2: memref<8x128xf32, #tpu.memory_space<vmem>>, %arg3: memref<8x128xf32, #tpu.memory_space<vmem>>, %arg4: memref<1x8x128xbf16, #tpu.memory_space<vmem>>, %arg5: memref<1x8x128xbf16, #tpu.memory_space<vmem>>) attributes {dimension_semantics = [#tpu.dimension_semantics<parallel>, #tpu.dimension_semantics<parallel>], iteration_bounds = array<i64: 1, 2>, scalar_prefetch = 0 : i64, scratch_operands = 0 : i64, tpu.core_type = #tpu.core_type<tc>, window_params = [{transform_indices = @transform_0, window_bounds = array<i64: 8, 128>}, {transform_indices = @transform_1, window_bounds = array<i64: 8, 128>}, {transform_indices = @transform_2, window_bounds = array<i64: 1, 8, 128>}, {transform_indices = @transform_3, window_bounds = array<i64: 1, 8, 128>}]} {
    %c0 = arith.constant 0 : index
    %c0_0 = arith.constant 0 : index
    %c0_1 = arith.constant 0 : index
    %0 = vector.load %arg4[%c0, %c0_0, %c0_1] : memref<1x8x128xbf16, #tpu.memory_space<vmem>>, vector<1x8x128xbf16>
    %1 = vector.shape_cast %0 : vector<1x8x128xbf16> to vector<8x128xbf16>
    %2 = arith.extf %1 : vector<8x128xbf16> to vector<8x128xf32>
    %c112_i32 = arith.constant 112 : i32
    %3 = tpu.dynamic_rotate %2 by %c112_i32 dim 1 : vector<8x128xf32>, i32 -> vector<8x128xf32>
    %c16_i32 = arith.constant 16 : i32
    %4 = tpu.dynamic_rotate %2 by %c16_i32 dim 1 : vector<8x128xf32>, i32 -> vector<8x128xf32>
    %5 = tpu.iota {dimensions = array<i32: 1>} : vector<8x128xi32>
    %c32_i32 = arith.constant 32 : i32
    %c0_i32 = arith.constant 0 : i32
    %6 = arith.cmpi eq, %c32_i32, %c0_i32 : i32
    %c1_i32 = arith.constant 1 : i32
    %7 = arith.select %6, %c1_i32, %c32_i32 : i32
    %8 = vector.broadcast %7 : i32 to vector<8x128xi32>
    %9 = arith.remsi %5, %8 : vector<8x128xi32>
    %c0_i32_2 = arith.constant 0 : i32
    %10 = vector.broadcast %c0_i32_2 : i32 to vector<8x128xi32>
    %11 = arith.cmpi ne, %9, %10 : vector<8x128xi32>
    %c0_i32_3 = arith.constant 0 : i32
    %12 = vector.broadcast %c0_i32_3 : i32 to vector<8x128xi32>
    %13 = arith.cmpi slt, %9, %12 : vector<8x128xi32>
    %c0_i32_4 = arith.constant 0 : i32
    %14 = arith.cmpi slt, %7, %c0_i32_4 : i32
    %15 = vector.broadcast %14 : i1 to vector<8x128xi1>
    %16 = vector.broadcast %15 : vector<8x128xi1> to vector<8x128xi1>
    %17 = arith.xori %13, %16 : vector<8x128xi1>
    %18 = arith.andi %17, %11 : vector<8x128xi1>
    %19 = vector.broadcast %7 : i32 to vector<8x128xi32>
    %20 = arith.addi %9, %19 : vector<8x128xi32>
    %21 = arith.select %18, %20, %9 : vector<8x128xi1>, vector<8x128xi32>
    %c16_i32_5 = arith.constant 16 : i32
    %22 = vector.broadcast %c16_i32_5 : i32 to vector<8x128xi32>
    %23 = arith.cmpi slt, %21, %22 : vector<8x128xi32>
    %24 = arith.select %23, %3, %4 : vector<8x128xi1>, vector<8x128xf32>
    %c0_6 = arith.constant 0 : index
    %c0_7 = arith.constant 0 : index
    %25 = vector.load %arg2[%c0_6, %c0_7] : memref<8x128xf32, #tpu.memory_space<vmem>>, vector<8x128xf32>
    %26 = arith.mulf %2, %25 : vector<8x128xf32>
    %c0_8 = arith.constant 0 : index
    %c0_9 = arith.constant 0 : index
    %27 = vector.load %arg3[%c0_8, %c0_9] : memref<8x128xf32, #tpu.memory_space<vmem>>, vector<8x128xf32>
    %28 = arith.mulf %24, %27 : vector<8x128xf32>
    %29 = arith.addf %26, %28 : vector<8x128xf32>
    %30 = arith.truncf %29 : vector<8x128xf32> to vector<8x128xbf16>
    %c0_10 = arith.constant 0 : index
    %c0_11 = arith.constant 0 : index
    %c0_12 = arith.constant 0 : index
    %31 = vector.load %arg5[%c0_10, %c0_11, %c0_12] : memref<1x8x128xbf16, #tpu.memory_space<vmem>>, vector<1x8x128xbf16>
    %32 = vector.shape_cast %31 : vector<1x8x128xbf16> to vector<8x128xbf16>
    %33 = vector.shape_cast %30 : vector<8x128xbf16> to vector<1x8x128xbf16>
    tpu.vector_store %arg5[%c0_10, %c0_11, %c0_12], %33 {strides = array<i32>} : memref<1x8x128xbf16, #tpu.memory_space<vmem>>, vector<1x8x128xbf16>,
    return
  }
  func.func @transform_0(%arg0: i32, %arg1: i32) -> (i32, i32) {
    %c0_i32 = arith.constant 0 : i32
    %c0_i32_0 = arith.constant 0 : i32
    return %arg0, %c0_i32 : i32, i32
  }
  func.func @transform_1(%arg0: i32, %arg1: i32) -> (i32, i32) {
    %c0_i32 = arith.constant 0 : i32
    %c0_i32_0 = arith.constant 0 : i32
    return %arg0, %c0_i32 : i32, i32
  }
  func.func @transform_2(%arg0: i32, %arg1: i32) -> (i32, i32, i32) {
    %c0_i32 = arith.constant 0 : i32
    %c0_i32_0 = arith.constant 0 : i32
    return %arg1, %arg0, %c0_i32 : i32, i32, i32
  }
  func.func @transform_3(%arg0: i32, %arg1: i32) -> (i32, i32, i32) {
    %c0_i32 = arith.constant 0 : i32
    %c0_i32_0 = arith.constant 0 : i32
    return %arg1, %arg0, %c0_i32 : i32, i32, i32
  }
}

</mosaic_0001>

<llo_original>
// kernel: rotary_forward.1
$region0: #{rotary_forward.1}
  #allocation0 [shape = 'u32[]', space=smem, size = 0x4, offset = 0x4, fixed_abs, tag = 'smem constant byte address 0x4 - core index']
  #allocation1 [shape = 'u32[144,128]{1,0:T(1,128)}', space=vmem, size = 0x12000, scoped, tag = 'internal scratch']
  %s0 = inlined_call_operand.vmem [shape: f32[8,128], index: 0, kind: input, shape index: {}]
  %s1 = inlined_call_operand.vmem [shape: f32[8,128], index: 1, kind: input, shape index: {}]
  %s2 = inlined_call_operand.vmem [shape: bf16[2,8,128], index: 2, kind: input, shape index: {}, may-alias: {2,3}]
  %s3 = inlined_call_operand.vmem [shape: bf16[2,8,128], index: 3, kind: output, shape index: {}, may-alias: {2,3}]
  %s4 = sld [smem:[#allocation0]]
  $region45: #{rotary_forward.1} parent=0
    _
  %s6 = ssub.s32 1, %s4
  %s7 = scalar_select 0, %s6, %s4
  loop: start=0, step=1, limit=4
  $region2: #{rotary_forward.1} parent=0 // loop_pre_header
    _
  $region3: #{rotary_forward.1} parent=0 // loop_header
    %s9 = sphi 0, %s13
    %p10 = scmp.ge.s32.totalorder %s9, 4
    %s16 = sphi 0, %s28
    %s17 = sphi 0, %s24
    %s18 = sphi 0, %s16
    %s19 = sphi 0, %s17
    %s20 = sphi 0, %s18
    %s21 = sphi 0, %s19
    %s31 = sphi 0, %s33
    %s34 = sphi 0, %s31
    %s35 = sphi 0, %s34
    %s51 = sphi 0, %s35
    %s57 = sphi 0, %s59
    %s60 = sphi 0, %s57
    %s61 = sphi 0, %s60
    %s77 = sphi 0, %s61
    %s85 = sphi 0, %s87
    %s88 = sphi 0, %s85
    %s89 = sphi 0, %s88
    %s105 = sphi 0, %s89
    %s113 = sphi 0, %s115
    %s116 = sphi 0, %s113
    %s117 = sphi 0, %s116
    %s133 = sphi 0, %s117
  $region4: #{rotary_forward.1} parent=0 // loop_header_branch
    %12 = sbr.rel (%p10) target = $region8
  $region5: #{rotary_forward.1} parent=0 // loop_body
    %s14 = ssub.s32 %s9, 1
    %s15 = ssub.s32 %s9, 2
    %s22 = sadd.s32 1, %s17
    %p23 = scmp.ge.s32.totalorder %s22, 2
    %s24 = scalar_select %p23, 0, %s22
    %s25 = sadd.s32 1, %s16
    %s26 = scalar_select %p23, %s25, %s16
    %p27 = scmp.ge.s32.totalorder %s26, 1
    %s28 = scalar_select %p27, 0, %s26
    %s29 = ssub.s32 %s16, %s28
    %p30 = scmp.eq.s32.totalorder %s29, 0
    %s32 = sadd.s32 %s31, 1
    %s33 = scalar_select %p30, %s31, %s32
    %p36 = pneg %p30
    %p37 = scmp.eq.s32.totalorder %s9, 1
    %p38 = por %p36, %p37
    %p39 = scmp.ne.s32.totalorder %s31, %s34
    %p40 = scmp.eq.s32.totalorder %s9, 0
    %p41 = por %p39, %p40
    %p42 = scmp.ne.s32.totalorder %s31, %s34
    %p43 = scmp.eq.s32.totalorder %s14, 1
    %p44 = por %p42, %p43
    %p45 = scmp.ne.s32.totalorder %s34, %s35
    %p46 = scmp.eq.s32.totalorder %s14, 0
    %p47 = por %p45, %p46
    %p48 = scmp.ne.s32.totalorder %s34, %s35
    %p49 = scmp.eq.s32.totalorder %s15, 1
    %p50 = por %p48, %p49
    %p52 = scmp.ne.s32.totalorder %s35, %s51
    %p53 = scmp.eq.s32.totalorder %s15, 0
    %p54 = por %p52, %p53
    %s55 = ssub.s32 %s16, %s28
    %p56 = scmp.eq.s32.totalorder %s55, 0
    %s58 = sadd.s32 %s57, 1
    %s59 = scalar_select %p56, %s57, %s58
    %p62 = pneg %p56
    %p63 = scmp.eq.s32.totalorder %s9, 1
    %p64 = por %p62, %p63
    %p65 = scmp.ne.s32.totalorder %s57, %s60
    %p66 = scmp.eq.s32.totalorder %s9, 0
    %p67 = por %p65, %p66
    %p68 = scmp.ne.s32.totalorder %s57, %s60
    %p69 = scmp.eq.s32.totalorder %s14, 1
    %p70 = por %p68, %p69
    %p71 = scmp.ne.s32.totalorder %s60, %s61
    %p72 = scmp.eq.s32.totalorder %s14, 0
    %p73 = por %p71, %p72
    %p74 = scmp.ne.s32.totalorder %s60, %s61
    %p75 = scmp.eq.s32.totalorder %s15, 1
    %p76 = por %p74, %p75
    %p78 = scmp.ne.s32.totalorder %s61, %s77
    %p79 = scmp.eq.s32.totalorder %s15, 0
    %p80 = por %p78, %p79
    %s81 = ssub.s32 %s17, %s24
    %s82 = ssub.s32 %s16, %s28
    %s83 = sor.u32 %s81, %s82
    %p84 = scmp.eq.s32.totalorder %s83, 0
    %s86 = sadd.s32 %s85, 1
    %s87 = scalar_select %p84, %s85, %s86
    %p90 = pneg %p84
    %p91 = scmp.eq.s32.totalorder %s9, 1
    %p92 = por %p90, %p91
    %p93 = scmp.ne.s32.totalorder %s85, %s88
    %p94 = scmp.eq.s32.totalorder %s9, 0
    %p95 = por %p93, %p94
    %p96 = scmp.ne.s32.totalorder %s85, %s88
    %p97 = scmp.eq.s32.totalorder %s14, 1
    %p98 = por %p96, %p97
    %p99 = scmp.ne.s32.totalorder %s88, %s89
    %p100 = scmp.eq.s32.totalorder %s14, 0
    %p101 = por %p99, %p100
    %p102 = scmp.ne.s32.totalorder %s88, %s89
    %p103 = scmp.eq.s32.totalorder %s15, 1
    %p104 = por %p102, %p103
    %p106 = scmp.ne.s32.totalorder %s89, %s105
    %p107 = scmp.eq.s32.totalorder %s15, 0
    %p108 = por %p106, %p107
    %s109 = ssub.s32 %s17, %s24
    %s110 = ssub.s32 %s16, %s28
    %s111 = sor.u32 %s109, %s110
    %p112 = scmp.eq.s32.totalorder %s111, 0
    %s114 = sadd.s32 %s113, 1
    %s115 = scalar_select %p112, %s113, %s114
    %p118 = pneg %p112
    %p119 = scmp.eq.s32.totalorder %s9, 1
    %p120 = por %p118, %p119
    %p121 = scmp.ne.s32.totalorder %s113, %s116
    %p122 = scmp.eq.s32.totalorder %s9, 0
    %p123 = por %p121, %p122
    %p124 = scmp.ne.s32.totalorder %s113, %s116
    %p125 = scmp.eq.s32.totalorder %s14, 1
    %p126 = por %p124, %p125
    %p127 = scmp.ne.s32.totalorder %s116, %s117
    %p128 = scmp.eq.s32.totalorder %s14, 0
    %p129 = por %p127, %p128
    %p130 = scmp.ne.s32.totalorder %s116, %s117
    %p131 = scmp.eq.s32.totalorder %s15, 1
    %p132 = por %p130, %p131
    %p134 = scmp.ne.s32.totalorder %s117, %s133
    %p135 = scmp.eq.s32.totalorder %s15, 0
    %p136 = por %p134, %p135
    %p137 = scmp.le.s32.totalorder 1, %s9
    %p138 = scmp.lt.s32.totalorder %s9, 3
    %p139 = pnand %p137, %p138
    %p140 = pneg %p139
    // Predicated region
    $region9: #{rotary_forward.1} parent=5 // pred_check
      _
    $region10: #{rotary_forward.1} parent=5 // pred_check_branch
      %142 = sbr.rel (%p139) target = $region12
    $region11: #{rotary_forward.1} parent=5 // pred_region
      %s143 = ssub.s32 %s9, 1
      // Predicated region
      $region13: #{rotary_forward.1} parent=11 // pred_check
        %p144 = pneg %p47
      $region14: #{rotary_forward.1} parent=11 // pred_check_branch
        %146 = sbr.rel (%p144) target = $region16
      $region15: #{rotary_forward.1} parent=11 // pred_region
        %p147 = scmp.lt.s32.totalorder %s18, 0
        %s148 = scalar_select %p147, %s18, 0
        %s149 = smul.addr %s148, 8
        %s150 = scalar_lea.vmem %s0, %s149
      $region16: #{rotary_forward.1} parent=11 // pred_fallthru
        _
      // Predicated region
      $region17: #{rotary_forward.1} parent=11 // pred_check
        %p151 = pneg %p73
      $region18: #{rotary_forward.1} parent=11 // pred_check_branch
        %153 = sbr.rel (%p151) target = $region20
      $region19: #{rotary_forward.1} parent=11 // pred_region
        %p154 = scmp.lt.s32.totalorder %s18, 0
        %s155 = scalar_select %p154, %s18, 0
        %s156 = smul.addr %s155, 8
        %s157 = scalar_lea.vmem %s1, %s156
      $region20: #{rotary_forward.1} parent=11 // pred_fallthru
        _
    $region12: #{rotary_forward.1} parent=5 // pred_fallthru
      _
    %p158 = scmp.lt.s32.totalorder %s9, 2
    // Predicated region
    $region21: #{rotary_forward.1} parent=5 // pred_check
      %p159 = pneg %p158
    $region22: #{rotary_forward.1} parent=5 // pred_check_branch
      %161 = sbr.rel (%p159) target = $region24
    $region23: #{rotary_forward.1} parent=5 // pred_region
      // Predicated region
      $region25: #{rotary_forward.1} parent=23 // pred_check
        %p162 = pneg %p95
      $region26: #{rotary_forward.1} parent=23 // pred_check_branch
        %164 = sbr.rel (%p162) target = $region28
      $region27: #{rotary_forward.1} parent=23 // pred_region
        %p165 = scmp.lt.s32.totalorder %s17, 1
        %s166 = scalar_select %p165, %s17, 1
        %p167 = scmp.lt.s32.totalorder %s16, 0
        %s168 = scalar_select %p167, %s16, 0
        %s169 = sadd.s32 %s168, %s166
        %s170 = smul.addr %s169, 4
        %s171 = scalar_lea.vmem %s2, %s170
      $region28: #{rotary_forward.1} parent=23 // pred_fallthru
        _
    $region24: #{rotary_forward.1} parent=5 // pred_fallthru
      _
    %p172 = scmp.le.s32.totalorder 1, %s9
    %p173 = scmp.lt.s32.totalorder %s9, 3
    %p174 = pnand %p172, %p173
    %p175 = pneg %p174
    // Predicated region
    $region29: #{rotary_forward.1} parent=5 // pred_check
      _
    $region30: #{rotary_forward.1} parent=5 // pred_check_branch
      %177 = sbr.rel (%p174) target = $region32
    $region31: #{rotary_forward.1} parent=5 // pred_region
      %s178 = ssub.s32 %s9, 1
      %p179 = scmp.lt.s32.totalorder %s18, 0
      %s180 = scalar_select %p179, %s18, 0
      %s181 = smul.addr %s180, 8
      %s182 = scalar_lea.vmem %s0, %s181
      %p183 = pneg %p47
      %p184 = pneg %p44
      %p185 = scmp.lt.s32.totalorder %s18, 0
      %s186 = scalar_select %p185, %s18, 0
      %s187 = smul.addr %s186, 8
      %s188 = scalar_lea.vmem %s1, %s187
      %p189 = pneg %p73
      %p190 = pneg %p70
      %p191 = scmp.lt.s32.totalorder %s19, 1
      %s192 = scalar_select %p191, %s19, 1
      %p193 = scmp.lt.s32.totalorder %s18, 0
      %s194 = scalar_select %p193, %s18, 0
      %s195 = sadd.s32 %s194, %s192
      %s196 = smul.addr %s195, 4
      %s197 = scalar_lea.vmem %s2, %s196
      %p198 = pneg %p101
      %p199 = pneg %p98
      %p200 = pneg %p129
      %p201 = pneg %p126
      %p202 = scmp.lt.s32.totalorder %s19, 1
      %s203 = scalar_select %p202, %s19, 1
      %p204 = scmp.lt.s32.totalorder %s18, 0
      %s205 = scalar_select %p204, %s18, 0
      %s206 = sadd.s32 %s205, %s203
      %s207 = smul.addr %s206, 4
      %s208 = scalar_lea.vmem %s3, %s207
      %p209 = scmp.lt.s32.totalorder %s18, 0
      %s210 = scalar_select %p209, %s18, 0
      %s211 = smul.addr %s210, 8
      %s212 = scalar_lea.vmem %s0, %s211
      %p213 = scmp.lt.s32.totalorder %s18, 0
      %s214 = scalar_select %p213, %s18, 0
      %s215 = smul.addr %s214, 8
      %s216 = scalar_lea.vmem %s1, %s215
      %p217 = scmp.lt.s32.totalorder %s19, 1
      %s218 = scalar_select %p217, %s19, 1
      %p219 = scmp.lt.s32.totalorder %s18, 0
      %s220 = scalar_select %p219, %s18, 0
      %s221 = sadd.s32 %s220, %s218
      %s222 = smul.addr %s221, 4
      %s223 = scalar_lea.vmem %s2, %s222
      %p224 = scmp.lt.s32.totalorder %s19, 1
      %s225 = scalar_select %p224, %s19, 1
      %p226 = scmp.lt.s32.totalorder %s18, 0
      %s227 = scalar_select %p226, %s18, 0
      %s228 = sadd.s32 %s227, %s225
      %s229 = smul.addr %s228, 4
      %s230 = scalar_lea.vmem %s3, %s229
      %v231 = vld [vmem:[%s223] sm:$0xf]
      %v232 = vunpack.c.l.bf16 %v231
      %233 = vrot.lane.b32.xlu0 %v232, 112
      %v234 = vpop.permute.xlu0 %233
      %235 = vrot.lane.b32.xlu0 %v232, 16
      %v236 = vpop.permute.xlu0 %235
      %v237 = vlaneseq
      %v238 = vand.u32 %v237, 127
      %vm239 = vcmp.lt.s32.totalorder %v238, 0
      %v240 = vsub.s32 0, %v238
      %v241 = vsel %vm239, %v240, %v238
      %v242 = vshrl.u32 %v241, 5
      %v243 = vand.u32 %v241, 31
      %v244 = vsub.s32 0, %v243
      %v245 = vsel %vm239, %v244, %v243
      %vm246 = vcmp.ne.s32.totalorder %v245, 0
      %vm247 = vcmp.lt.s32.totalorder %v245, 0
      %vm248 = vmand %vm247, %vm246
      %v249 = vadd.s32 %v245, 32
      %v250 = vsel %vm248, %v249, %v245
      %vm251 = vcmp.lt.s32.totalorder %v250, 16
      %v252 = vsel %vm251, %v234, %v236
      %v253 = vld [vmem:[%s212] sm:$0xff]
      %v254 = vmul.f32 %v232, %v253
      %v255 = vld [vmem:[%s216] sm:$0xff]
      %v256 = vmul.f32 %v252, %v255
      %v257 = vadd.f32 %v254, %v256
      %v258 = vpack.c.bf16 %v257, %v257
      %259 = vst [vmem:[%s230] sm:$0xf] %v258
      %p260 = scmp.lt.s32.totalorder %s19, 1
      %s261 = scalar_select %p260, %s19, 1
      %p262 = scmp.lt.s32.totalorder %s18, 0
      %s263 = scalar_select %p262, %s18, 0
      %s264 = sadd.s32 %s263, %s261
      %s265 = smul.addr %s264, 4
      %s266 = scalar_lea.vmem %s3, %s265
      // Predicated region
      $region33: #{rotary_forward.1} parent=31 // pred_check
        %p267 = pneg %p126
      $region34: #{rotary_forward.1} parent=31 // pred_check_branch
        %269 = sbr.rel (%p267) target = $region36
      $region35: #{rotary_forward.1} parent=31 // pred_region
        _
      $region36: #{rotary_forward.1} parent=31 // pred_fallthru
        _
    $region32: #{rotary_forward.1} parent=5 // pred_fallthru
      _
    %p270 = scmp.le.s32.totalorder 2, %s9
    // Predicated region
    $region37: #{rotary_forward.1} parent=5 // pred_check
      %p271 = pneg %p270
    $region38: #{rotary_forward.1} parent=5 // pred_check_branch
      %273 = sbr.rel (%p271) target = $region40
    $region39: #{rotary_forward.1} parent=5 // pred_region
      %s274 = ssub.s32 %s9, 2
      // Predicated region
      $region41: #{rotary_forward.1} parent=39 // pred_check
        %p275 = pneg %p132
      $region42: #{rotary_forward.1} parent=39 // pred_check_branch
        %277 = sbr.rel (%p275) target = $region44
      $region43: #{rotary_forward.1} parent=39 // pred_region
        %p278 = scmp.lt.s32.totalorder %s21, 1
        %s279 = scalar_select %p278, %s21, 1
        %p280 = scmp.lt.s32.totalorder %s20, 0
        %s281 = scalar_select %p280, %s20, 0
        %s282 = sadd.s32 %s281, %s279
        %s283 = smul.addr %s282, 4
        %s284 = scalar_lea.vmem %s3, %s283
      $region44: #{rotary_forward.1} parent=39 // pred_fallthru
        _
    $region40: #{rotary_forward.1} parent=5 // pred_fallthru
      _
  $region6: #{rotary_forward.1} parent=0 // loop_footer
    %s13 = sadd.s32 1, %s9
  $region7: #{rotary_forward.1} parent=0 // loop_footer_branch
    %8 = sbr.rel target = $region3
  $region8: #{rotary_forward.1} parent=0 // loop_exit
    _

</llo_original>
